<compile_context>
chip_gen: v5e
topology: v5e:2x2
jax: 0.10.0
libtpu: 0.0.40
codegen_flags: <defaults>
</compile_context>

<pallas_src>
import functools

import jax
import jax.numpy as jnp
from jax import lax
from jax.experimental import pallas as pl
from jax.experimental.pallas import tpu as pltpu


_STRIP = 128  # in-kernel strip width = one vreg lane width


def _round_up(x, m):
    return (x + m - 1) // m * m


def fm_kernel(x_ref, tbl_ref, w_ref, b_ref, out_ref, *, num_factors):
    # x_ref:   (F, TILE_B)  int32  field indices, batch on lanes
    # tbl_ref: (R, NIP)     f32    rows [0:K]=emb^T, [K]=sum(emb^2,-1), [K+1]=fc
    # w_ref:   (1, 1)       f32    SMEM (LazyLinear weight, in_features=1)
    # b_ref:   (1, 1)       f32    SMEM (LazyLinear bias)
    # out_ref: (1, TILE_B)  f32    lane-dense sigmoid outputs
    num_fields, tile_b = x_ref.shape
    nip = tbl_ref.shape[1]
    k = num_factors
    num_strips = tile_b // _STRIP

    # Hoisted loop invariants.
    w = w_ref[0, 0]
    b = b_ref[0, 0]
    row_ids = lax.broadcasted_iota(jnp.int32, (nip, _STRIP), 0)  # 16 vregs
    tbl = tbl_ref[...]                                           # ~5 vregs

    def strip_body(si, carry):
        off = pl.multiple_of(si * _STRIP, _STRIP)

        # Transposed field-count matrix Ct (NIP, STRIP) for this strip.
        counts = jnp.zeros((nip, _STRIP), jnp.float32)           # 16 vregs
        for f in range(num_fields):  # static unroll, num_fields is tiny
            idx_f = x_ref[f:f + 1, pl.ds(off, _STRIP)]           # (1, STRIP)
            counts = counts + (row_ids == idx_f).astype(jnp.float32)

        # One MXU matmul fuses the gather and every field reduction:
        #   p[:K]   = sum over fields of embedding vectors        (K, STRIP)
        #   p[K]    = sum over fields & factors of emb**2         (1, STRIP)
        #   p[K+1]  = sum over fields of fc (first-order) values  (1, STRIP)
        p = jnp.dot(tbl, counts, preferred_element_type=jnp.float32)

        s = p[:k, :]                                             # (K, STRIP)
        sum_of_square = p[k:k + 1, :]                            # (1, STRIP)
        first_order = p[k + 1:k + 2, :]                          # (1, STRIP)

        square_of_sum = jnp.sum(s * s, axis=0, keepdims=True)    # (1, STRIP)
        interaction = 0.5 * (square_of_sum - sum_of_square)

        logits = first_order * w + b + interaction
        out_ref[:, pl.ds(off, _STRIP)] = jax.nn.sigmoid(logits)
        return carry

    # Short strip counts: full unroll (LLO scheduler visibility).  Long ones:
    # keep a real loop so each strip's counts live range stays bounded.
    unroll = True if num_strips <= 4 else 1
    lax.fori_loop(0, num_strips, strip_body, 0, unroll=unroll)


def factorization_machines(x, emb_table, fc_table, lin_w, lin_b, *, tile_b=2048):
    """x: (B, F) int32 indices in [0, num_inputs).  Returns (B, 1) f32."""
    batch, num_fields = x.shape
    num_inputs, num_factors = emb_table.shape

    # Packed, transposed table.  The in-kernel one-hot/count matmul assumes a
    # small vocabulary (sum(field_dims) = 45 here); pad only to the minimum
    # 128-lane contraction dim -- the count build is VPU-bound and scales
    # linearly with NIP, so do NOT enlarge it to "fill" the MXU.
    nip = _round_up(num_inputs, 128)
    nrows = _round_up(num_factors + 2, 8)
    emb_f32 = emb_table.astype(jnp.float32)
    tbl = jnp.zeros((nrows, nip), jnp.float32)
    tbl = tbl.at[:num_factors, :num_inputs].set(emb_f32.T)
    tbl = tbl.at[num_factors, :num_inputs].set(jnp.sum(emb_f32 ** 2, axis=1))
    tbl = tbl.at[num_factors + 1, :num_inputs].set(
        fc_table.astype(jnp.float32)[:, 0])

    # Lane-dense batch layout: big tiles amortize per-grid-step overhead; the
    # in-kernel strip loop keeps vreg pressure bounded regardless of tile_b.
    tile_b = max(_STRIP, _round_up(min(tile_b, _round_up(batch, _STRIP)), _STRIP))
    b_pad = _round_up(batch, tile_b)
    # Prefer >= 2 grid steps so the "parallel" batch axis can shard across
    # both TensorCores on v7x.
    if b_pad // tile_b < 2 and tile_b > _STRIP:
        tile_b = _round_up(tile_b // 2, _STRIP)
        b_pad = _round_up(batch, tile_b)

    # NOTE: in a serving loop, pass x pre-transposed/padded as (F, B_pad) to
    # avoid re-emitting this transpose+pad per call.
    x_t = jnp.zeros((num_fields, b_pad), jnp.int32)
    x_t = x_t.at[:, :batch].set(x.astype(jnp.int32).T)  # pad with valid index 0

    w = jnp.asarray(lin_w, jnp.float32).reshape(1, 1)
    b = jnp.asarray(lin_b, jnp.float32).reshape(1, 1)

    out = pl.pallas_call(
        functools.partial(fm_kernel, num_factors=num_factors),
        out_shape=jax.ShapeDtypeStruct((1, b_pad), jnp.float32),
        grid_spec=pltpu.PrefetchScalarGridSpec(
            num_scalar_prefetch=0,
            grid=(b_pad // tile_b,),
            in_specs=[
                pl.BlockSpec((num_fields, tile_b), lambda i: (0, i)),
                # Resident packed table: constant block index -> no per-step
                # re-fetch by the Pallas pipeline.
                pl.BlockSpec((nrows, nip), lambda i: (0, 0)),
                pl.BlockSpec(memory_space=pltpu.MemorySpace.SMEM),
                pl.BlockSpec(memory_space=pltpu.MemorySpace.SMEM),
            ],
            out_specs=pl.BlockSpec((1, tile_b), lambda i: (0, i)),
        ),
        compiler_params=pltpu.CompilerParams(
            dimension_semantics=("parallel",),
        ),
    )(x_t, tbl, w, b)

    return out[0, :batch].reshape(batch, 1)


def reference(x, emb_table, fc_table, lin_w, lin_b):
    emb = emb_table[x]                                     # (B, F, K)
    square_of_sum = jnp.sum(emb, axis=1) ** 2              # (B, K)
    sum_of_square = jnp.sum(emb ** 2, axis=1)              # (B, K)
    lin_in = jnp.sum(fc_table[x], axis=1)                  # (B, 1)
    y = lin_in @ lin_w.T + lin_b + 0.5 * jnp.sum(
        square_of_sum - sum_of_square, axis=1, keepdims=True
    )
    return jax.nn.sigmoid(y)


if __name__ == "__main__":
    # Module config: field_dims = [10, 20, 15], num_factors = 32
    field_dims = (10, 20, 15)
    num_inputs = int(sum(field_dims))   # 45
    num_factors = 32
    batch = 8
    num_fields = len(field_dims)

    key = jax.random.PRNGKey(0)
    k_emb, k_fc, k_w, k_b, k_x = jax.random.split(key, 5)

    emb_table = 0.1 * jax.random.normal(k_emb, (num_inputs, num_factors), jnp.float32)
    fc_table = 0.1 * jax.random.normal(k_fc, (num_inputs, 1), jnp.float32)
    lin_w = jax.random.normal(k_w, (1, 1), jnp.float32)    # LazyLinear(1) weight
    lin_b = jax.random.normal(k_b, (1,), jnp.float32)      # LazyLinear(1) bias

    x = jax.random.randint(k_x, (batch, num_fields), 0, num_inputs, dtype=jnp.int32)

    out = factorization_machines(x, emb_table, fc_table, lin_w, lin_b)
    out = jax.block_until_ready(out)

    ref = reference(x, emb_table, fc_table, lin_w, lin_b)
    assert out.shape == (batch, 1)
    max_err = float(jnp.max(jnp.abs(out - ref)))
    assert jnp.allclose(out, ref, atol=1e-4, rtol=1e-4), max_err

    print("KERNEL_OK")
</pallas_src>

<mosaic_0001>
module attributes {stable_mosaic.version = 11 : i64} {
  func.func @fm_kernel(%arg0: i32, %arg1: memref<3x128xi32, #tpu.memory_space<vmem>>, %arg2: memref<40x128xf32, #tpu.memory_space<vmem>>, %arg3: memref<1x1xf32, #tpu.memory_space<smem>>, %arg4: memref<1x1xf32, #tpu.memory_space<smem>>, %arg5: memref<1x128xf32, #tpu.memory_space<vmem>>) attributes {dimension_semantics = [#tpu.dimension_semantics<parallel>], iteration_bounds = array<i64: 1>, scalar_prefetch = 0 : i64, scratch_operands = 0 : i64, tpu.core_type = #tpu.core_type<tc>, window_params = [{transform_indices = @transform_0, window_bounds = array<i64: 3, 128>}, {pipeline_mode = #tpu.pipeline_mode<synchronous>, transform_indices = @transform_1, window_bounds = array<i64: 40, 128>}, {transform_indices = @transform_2, window_bounds = array<i64: 1, 1>}, {transform_indices = @transform_3, window_bounds = array<i64: 1, 1>}, {transform_indices = @transform_4, window_bounds = array<i64: 1, 128>}]} {
    %c0 = arith.constant 0 : index
    %c0_0 = arith.constant 0 : index
    %0 = memref.load %arg3[%c0, %c0_0] : memref<1x1xf32, #tpu.memory_space<smem>>
    %c0_1 = arith.constant 0 : index
    %c0_2 = arith.constant 0 : index
    %1 = memref.load %arg4[%c0_1, %c0_2] : memref<1x1xf32, #tpu.memory_space<smem>>
    %2 = tpu.iota {dimensions = array<i32: 0>} : vector<128x128xi32>
    %c0_3 = arith.constant 0 : index
    %c0_4 = arith.constant 0 : index
    %3 = vector.load %arg2[%c0_3, %c0_4] : memref<40x128xf32, #tpu.memory_space<vmem>>, vector<40x128xf32>
    %c0_i32 = arith.constant 0 : i32
    %c128_i32 = arith.constant 128 : i32
    %4 = arith.muli %c0_i32, %c128_i32 : i32
    %5 = tpu.assume_multiple %4, 128 : i32
    %cst = arith.constant 0.000000e+00 : f32
    %6 = vector.broadcast %cst : f32 to vector<128x128xf32>
    %c0_5 = arith.constant 0 : index
    %7 = arith.index_cast %5 : i32 to index
    %8 = vector.load %arg1[%c0_5, %7] : memref<3x128xi32, #tpu.memory_space<vmem>>, vector<1x128xi32>
    %9 = vector.broadcast %8 : vector<1x128xi32> to vector<128x128xi32>
    %10 = arith.cmpi eq, %2, %9 : vector<128x128xi32>
    %11 = arith.extui %10 : vector<128x128xi1> to vector<128x128xi32>
    %12 = arith.sitofp %11 : vector<128x128xi32> to vector<128x128xf32>
    %13 = arith.addf %6, %12 : vector<128x128xf32>
    %c1 = arith.constant 1 : index
    %14 = arith.index_cast %5 : i32 to index
    %15 = vector.load %arg1[%c1, %14] : memref<3x128xi32, #tpu.memory_space<vmem>>, vector<1x128xi32>
    %16 = vector.broadcast %15 : vector<1x128xi32> to vector<128x128xi32>
    %17 = arith.cmpi eq, %2, %16 : vector<128x128xi32>
    %18 = arith.extui %17 : vector<128x128xi1> to vector<128x128xi32>
    %19 = arith.sitofp %18 : vector<128x128xi32> to vector<128x128xf32>
    %20 = arith.addf %13, %19 : vector<128x128xf32>
    %c2 = arith.constant 2 : index
    %21 = arith.index_cast %5 : i32 to index
    %22 = vector.load %arg1[%c2, %21] : memref<3x128xi32, #tpu.memory_space<vmem>>, vector<1x128xi32>
    %23 = vector.broadcast %22 : vector<1x128xi32> to vector<128x128xi32>
    %24 = arith.cmpi eq, %2, %23 : vector<128x128xi32>
    %25 = arith.extui %24 : vector<128x128xi1> to vector<128x128xi32>
    %26 = arith.sitofp %25 : vector<128x128xi32> to vector<128x128xf32>
    %27 = arith.addf %20, %26 : vector<128x128xf32>
    %cst_6 = arith.constant dense<0.000000e+00> : vector<40x128xf32>
    %28 = tpu.matmul %3, %27, %cst_6 {dimension_numbers = #tpu.dot_dimension_numbers<[1], [0], [0], [1], [0, 0, 1, 1], [], []>} : vector<40x128xf32>, vector<128x128xf32>, vector<40x128xf32> -> vector<40x128xf32>
    %29 = vector.extract_strided_slice %28 {offsets = [0, 0], sizes = [32, 128], strides = [1, 1]} : vector<40x128xf32> to vector<32x128xf32>
    %30 = vector.extract_strided_slice %28 {offsets = [32, 0], sizes = [1, 128], strides = [1, 1]} : vector<40x128xf32> to vector<1x128xf32>
    %31 = vector.extract_strided_slice %28 {offsets = [33, 0], sizes = [1, 128], strides = [1, 1]} : vector<40x128xf32> to vector<1x128xf32>
    %32 = arith.mulf %29, %29 : vector<32x128xf32>
    %cst_7 = arith.constant dense<0.000000e+00> : vector<128xf32>
    %33 = vector.multi_reduction <add>, %32, %cst_7 [0] : vector<32x128xf32> to vector<128xf32>
    %34 = vector.shape_cast %33 : vector<128xf32> to vector<1x128xf32>
    %35 = arith.subf %34, %30 : vector<1x128xf32>
    %cst_8 = arith.constant 5.000000e-01 : f32
    %36 = vector.broadcast %cst_8 : f32 to vector<1x128xf32>
    %37 = arith.mulf %36, %35 : vector<1x128xf32>
    %38 = vector.broadcast %0 : f32 to vector<1x128xf32>
    %39 = arith.mulf %31, %38 : vector<1x128xf32>
    %40 = vector.broadcast %1 : f32 to vector<1x128xf32>
    %41 = arith.addf %39, %40 : vector<1x128xf32>
    %42 = arith.addf %41, %37 : vector<1x128xf32>
    %43 = arith.negf %42 : vector<1x128xf32>
    %44 = math.exp %43 : vector<1x128xf32>
    %cst_9 = arith.constant 1.000000e+00 : f32
    %45 = vector.broadcast %cst_9 : f32 to vector<1x128xf32>
    %46 = arith.addf %45, %44 : vector<1x128xf32>
    %47 = arith.divf %45, %46 : vector<1x128xf32>
    %c0_10 = arith.constant 0 : index
    %48 = arith.index_cast %5 : i32 to index
    %49 = vector.load %arg5[%c0_10, %48] : memref<1x128xf32, #tpu.memory_space<vmem>>, vector<1x128xf32>
    tpu.vector_store %arg5[%c0_10, %48], %47 {strides = array<i32>} : memref<1x128xf32, #tpu.memory_space<vmem>>, vector<1x128xf32>,
    %c1_i32 = arith.constant 1 : i32
    return
  }
  func.func @transform_0(%arg0: i32) -> (i32, i32) {
    %c0_i32 = arith.constant 0 : i32
    %c0_i32_0 = arith.constant 0 : i32
    return %c0_i32, %arg0 : i32, i32
  }
  func.func @transform_1(%arg0: i32) -> (i32, i32) {
    %c0_i32 = arith.constant 0 : i32
    %c0_i32_0 = arith.constant 0 : i32
    %c0_i32_1 = arith.constant 0 : i32
    return %c0_i32, %c0_i32_0 : i32, i32
  }
  func.func @transform_2(%arg0: i32) -> (i32, i32) {
    %c0_i32 = arith.constant 0 : i32
    %c0_i32_0 = arith.constant 0 : i32
    %c0_i32_1 = arith.constant 0 : i32
    return %c0_i32, %c0_i32_0 : i32, i32
  }
  func.func @transform_3(%arg0: i32) -> (i32, i32) {
    %c0_i32 = arith.constant 0 : i32
    %c0_i32_0 = arith.constant 0 : i32
    %c0_i32_1 = arith.constant 0 : i32
    return %c0_i32, %c0_i32_0 : i32, i32
  }
  func.func @transform_4(%arg0: i32) -> (i32, i32) {
    %c0_i32 = arith.constant 0 : i32
    %c0_i32_0 = arith.constant 0 : i32
    return %c0_i32, %arg0 : i32, i32
  }
}

</mosaic_0001>

<llo_original>
// kernel: tpu_custom_call.1
$region0: #{tpu_custom_call.1}
  #allocation0 [shape = 'u32[]', space=smem, size = 0x4, offset = 0x4, fixed_abs, tag = 'smem constant byte address 0x4 - core index']
  #allocation1 [shape = 'u32[72,128]{1,0:T(1,128)}', space=vmem, size = 0x9000, scoped, tag = 'internal scratch']
  #allocation2 [shape = 'f32[1,1]{1,0:T(1,128)S(6)}', space=smem, size = 0x200, scoped, tag = 'scoped memory for tpu_custom_call.1']
  #allocation3 [shape = 'f32[1,1]{1,0:T(1,128)S(6)}', space=smem, size = 0x200, scoped, tag = 'scoped memory for tpu_custom_call.1']
  %s0 = inlined_call_operand.vmem [shape: s32[3,128], index: 0, kind: input, shape index: {}]
  %s1 = inlined_call_operand.hbm [shape: f32[40,128], index: 1, kind: input, shape index: {}]
  %s2 = inlined_call_operand.<no memory space> [shape: f32[1,1], index: 2, kind: input, shape index: {}]
  %s3 = inlined_call_operand.<no memory space> [shape: f32[1,1], index: 3, kind: input, shape index: {}]
  %s4 = inlined_call_operand.hbm [shape: f32[1,128], index: 4, kind: output, shape index: {}]
  %s5 = sld [smem:[#allocation0]]
  $region30: #{tpu_custom_call.1} parent=0
    _
  %s7 = ssub.s32 1, %s5
  %s8 = scalar_select 0, %s7, %s5
  %9 = sst [smem:[#allocation2]] %s2
  %10 = sst [smem:[#allocation3]] %s3
  $region1: #{tpu_custom_call.1} parent=0
    #allocation4 [shape = 'u8[20480]{0}', space=vmem, size = 0x5000, scoped, tag = 'input window, operand 1, single buffered']
    #allocation5 [shape = 's32[1]{0}', space=sflag, size = 0x4, scoped, tag = 'scoped memory for tpu_custom_call.1']
    #allocation6 [shape = 's32[1]{0}', space=sflag, size = 0x4, scoped, tag = 'scoped memory for tpu_custom_call.1']
    #allocation7 [shape = 'u8[512]{0}', space=vmem, size = 0x400, scoped, tag = 'output window, operand 0, single buffered']
    %11 = vsyncpa [#allocation5], 0
    %12 = vsyncpa [#allocation6], 0
    // Predicated region
    $region2: #{tpu_custom_call.1} parent=1 // pred_check
      _
    $region3: #{tpu_custom_call.1} parent=1 // pred_check_branch
      %14 = sbr.rel (0) target = $region5
    $region4: #{tpu_custom_call.1} parent=1 // pred_region
      _
    $region5: #{tpu_custom_call.1} parent=1 // pred_fallthru
      _
    // Predicated region
    $region6: #{tpu_custom_call.1} parent=1 // pred_check
      _
    $region7: #{tpu_custom_call.1} parent=1 // pred_check_branch
      %16 = sbr.rel (0) target = $region9
    $region8: #{tpu_custom_call.1} parent=1 // pred_region
      %18 = vsyncadd [#allocation5], 0
      %s19 = sshll.u32 %s1, 4
      %s20 = int_to_ptr.hbm [resolvable:$true] %s19
      %s21 = sshll.u32 [#allocation4], 4
      %s22 = int_to_ptr.vmem [resolvable:$true] %s21
      %27 = dma.hbm_to_vmem [thread:$0]  %s20, 640, %s22, [#allocation5], 128, 128, 8
    $region9: #{tpu_custom_call.1} parent=1 // pred_fallthru
      _
    // Predicated region
    $region10: #{tpu_custom_call.1} parent=1 // pred_check
      _
    $region11: #{tpu_custom_call.1} parent=1 // pred_check_branch
      %29 = sbr.rel (0) target = $region13
    $region12: #{tpu_custom_call.1} parent=1 // pred_region
      _
    $region13: #{tpu_custom_call.1} parent=1 // pred_fallthru
      _
    // Predicated region
    $region14: #{tpu_custom_call.1} parent=1 // pred_check
      _
    $region15: #{tpu_custom_call.1} parent=1 // pred_check_branch
      %31 = sbr.rel (0) target = $region17
    $region16: #{tpu_custom_call.1} parent=1 // pred_region
      _
    $region17: #{tpu_custom_call.1} parent=1 // pred_fallthru
      _
    // Predicated region
    $region18: #{tpu_custom_call.1} parent=1 // pred_check
      _
    $region19: #{tpu_custom_call.1} parent=1 // pred_check_branch
      %33 = sbr.rel (0) target = $region21
    $region20: #{tpu_custom_call.1} parent=1 // pred_region
      %35 = dma.done [#allocation5], 640
    $region21: #{tpu_custom_call.1} parent=1 // pred_fallthru
      _
    %s36 = sld [smem:[#allocation2]]
    %s37 = sld [smem:[#allocation3]]
    %v38 = vlaneseq
    %v39 = vshrl.u32 %v38, 7
    %v40 = vadd.s32 %v39, 8
    %v41 = vadd.s32 %v39, 16
    %v42 = vadd.s32 %v39, 24
    %v43 = vadd.s32 %v39, 32
    %v44 = vadd.s32 %v39, 40
    %v45 = vadd.s32 %v39, 48
    %v46 = vadd.s32 %v39, 56
    %v47 = vadd.s32 %v39, 64
    %v48 = vadd.s32 %v39, 72
    %v49 = vadd.s32 %v39, 80
    %v50 = vadd.s32 %v39, 88
    %v51 = vadd.s32 %v39, 96
    %v52 = vadd.s32 %v39, 104
    %v53 = vadd.s32 %v39, 112
    %v54 = vadd.s32 %v39, 120
    %v55 = vld [vmem:[#allocation4] sm:$0xff]
    %v56 = vld [vmem:[#allocation4 + $0x8] sm:$0xff]
    %v57 = vld [vmem:[#allocation4 + $0x10] sm:$0xff]
    %v58 = vld [vmem:[#allocation4 + $0x18] sm:$0xff]
    %v59 = vld [vmem:[#allocation4 + $0x20] sm:$0xff]
    %v60 = vld [vmem:[%s0] sm:$0x1]
    %v61 = vperm.slane %v60, 0
    %vm62 = vcmp.eq.s32.totalorder %v39, %v61
    %vm63 = vcmp.eq.s32.totalorder %v40, %v61
    %vm64 = vcmp.eq.s32.totalorder %v41, %v61
    %vm65 = vcmp.eq.s32.totalorder %v42, %v61
    %vm66 = vcmp.eq.s32.totalorder %v43, %v61
    %vm67 = vcmp.eq.s32.totalorder %v44, %v61
    %vm68 = vcmp.eq.s32.totalorder %v45, %v61
    %vm69 = vcmp.eq.s32.totalorder %v46, %v61
    %vm70 = vcmp.eq.s32.totalorder %v47, %v61
    %vm71 = vcmp.eq.s32.totalorder %v48, %v61
    %vm72 = vcmp.eq.s32.totalorder %v49, %v61
    %vm73 = vcmp.eq.s32.totalorder %v50, %v61
    %vm74 = vcmp.eq.s32.totalorder %v51, %v61
    %vm75 = vcmp.eq.s32.totalorder %v52, %v61
    %vm76 = vcmp.eq.s32.totalorder %v53, %v61
    %vm77 = vcmp.eq.s32.totalorder %v54, %v61
    %v78 = vsel %vm62, 1, 0
    %v79 = vsel %vm63, 1, 0
    %v80 = vsel %vm64, 1, 0
    %v81 = vsel %vm65, 1, 0
    %v82 = vsel %vm66, 1, 0
    %v83 = vsel %vm67, 1, 0
    %v84 = vsel %vm68, 1, 0
    %v85 = vsel %vm69, 1, 0
    %v86 = vsel %vm70, 1, 0
    %v87 = vsel %vm71, 1, 0
    %v88 = vsel %vm72, 1, 0
    %v89 = vsel %vm73, 1, 0
    %v90 = vsel %vm74, 1, 0
    %v91 = vsel %vm75, 1, 0
    %v92 = vsel %vm76, 1, 0
    %v93 = vsel %vm77, 1, 0
    %v94 = vcvt.s32.f32 %v78
    %v95 = vcvt.s32.f32 %v79
    %v96 = vcvt.s32.f32 %v80
    %v97 = vcvt.s32.f32 %v81
    %v98 = vcvt.s32.f32 %v82
    %v99 = vcvt.s32.f32 %v83
    %v100 = vcvt.s32.f32 %v84
    %v101 = vcvt.s32.f32 %v85
    %v102 = vcvt.s32.f32 %v86
    %v103 = vcvt.s32.f32 %v87
    %v104 = vcvt.s32.f32 %v88
    %v105 = vcvt.s32.f32 %v89
    %v106 = vcvt.s32.f32 %v90
    %v107 = vcvt.s32.f32 %v91
    %v108 = vcvt.s32.f32 %v92
    %v109 = vcvt.s32.f32 %v93
    %v110 = vadd.f32 %v94, 0.0
    %v111 = vadd.f32 %v95, 0.0
    %v112 = vadd.f32 %v96, 0.0
    %v113 = vadd.f32 %v97, 0.0
    %v114 = vadd.f32 %v98, 0.0
    %v115 = vadd.f32 %v99, 0.0
    %v116 = vadd.f32 %v100, 0.0
    %v117 = vadd.f32 %v101, 0.0
    %v118 = vadd.f32 %v102, 0.0
    %v119 = vadd.f32 %v103, 0.0
    %v120 = vadd.f32 %v104, 0.0
    %v121 = vadd.f32 %v105, 0.0
    %v122 = vadd.f32 %v106, 0.0
    %v123 = vadd.f32 %v107, 0.0
    %v124 = vadd.f32 %v108, 0.0
    %v125 = vadd.f32 %v109, 0.0
    %v126 = vld [vmem:[%s0 + $0x1] sm:$0x1]
    %v127 = vperm.slane %v126, 0
    %vm128 = vcmp.eq.s32.totalorder %v39, %v127
    %vm129 = vcmp.eq.s32.totalorder %v40, %v127
    %vm130 = vcmp.eq.s32.totalorder %v41, %v127
    %vm131 = vcmp.eq.s32.totalorder %v42, %v127
    %vm132 = vcmp.eq.s32.totalorder %v43, %v127
    %vm133 = vcmp.eq.s32.totalorder %v44, %v127
    %vm134 = vcmp.eq.s32.totalorder %v45, %v127
    %vm135 = vcmp.eq.s32.totalorder %v46, %v127
    %vm136 = vcmp.eq.s32.totalorder %v47, %v127
    %vm137 = vcmp.eq.s32.totalorder %v48, %v127
    %vm138 = vcmp.eq.s32.totalorder %v49, %v127
    %vm139 = vcmp.eq.s32.totalorder %v50, %v127
    %vm140 = vcmp.eq.s32.totalorder %v51, %v127
    %vm141 = vcmp.eq.s32.totalorder %v52, %v127
    %vm142 = vcmp.eq.s32.totalorder %v53, %v127
    %vm143 = vcmp.eq.s32.totalorder %v54, %v127
    %v144 = vsel %vm128, 1, 0
    %v145 = vsel %vm129, 1, 0
    %v146 = vsel %vm130, 1, 0
    %v147 = vsel %vm131, 1, 0
    %v148 = vsel %vm132, 1, 0
    %v149 = vsel %vm133, 1, 0
    %v150 = vsel %vm134, 1, 0
    %v151 = vsel %vm135, 1, 0
    %v152 = vsel %vm136, 1, 0
    %v153 = vsel %vm137, 1, 0
    %v154 = vsel %vm138, 1, 0
    %v155 = vsel %vm139, 1, 0
    %v156 = vsel %vm140, 1, 0
    %v157 = vsel %vm141, 1, 0
    %v158 = vsel %vm142, 1, 0
    %v159 = vsel %vm143, 1, 0
    %v160 = vcvt.s32.f32 %v144
    %v161 = vcvt.s32.f32 %v145
    %v162 = vcvt.s32.f32 %v146
    %v163 = vcvt.s32.f32 %v147
    %v164 = vcvt.s32.f32 %v148
    %v165 = vcvt.s32.f32 %v149
    %v166 = vcvt.s32.f32 %v150
    %v167 = vcvt.s32.f32 %v151
    %v168 = vcvt.s32.f32 %v152
    %v169 = vcvt.s32.f32 %v153
    %v170 = vcvt.s32.f32 %v154
    %v171 = vcvt.s32.f32 %v155
    %v172 = vcvt.s32.f32 %v156
    %v173 = vcvt.s32.f32 %v157
    %v174 = vcvt.s32.f32 %v158
    %v175 = vcvt.s32.f32 %v159
    %v176 = vadd.f32 %v110, %v160
    %v177 = vadd.f32 %v111, %v161
    %v178 = vadd.f32 %v112, %v162
    %v179 = vadd.f32 %v113, %v163
    %v180 = vadd.f32 %v114, %v164
    %v181 = vadd.f32 %v115, %v165
    %v182 = vadd.f32 %v116, %v166
    %v183 = vadd.f32 %v117, %v167
    %v184 = vadd.f32 %v118, %v168
    %v185 = vadd.f32 %v119, %v169
    %v186 = vadd.f32 %v120, %v170
    %v187 = vadd.f32 %v121, %v171
    %v188 = vadd.f32 %v122, %v172
    %v189 = vadd.f32 %v123, %v173
    %v190 = vadd.f32 %v124, %v174
    %v191 = vadd.f32 %v125, %v175
    %v192 = vld [vmem:[%s0 + $0x2] sm:$0x1]
    %v193 = vperm.slane %v192, 0
    %vm194 = vcmp.eq.s32.totalorder %v39, %v193
    %vm195 = vcmp.eq.s32.totalorder %v40, %v193
    %vm196 = vcmp.eq.s32.totalorder %v41, %v193
    %vm197 = vcmp.eq.s32.totalorder %v42, %v193
    %vm198 = vcmp.eq.s32.totalorder %v43, %v193
    %vm199 = vcmp.eq.s32.totalorder %v44, %v193
    %vm200 = vcmp.eq.s32.totalorder %v45, %v193
    %vm201 = vcmp.eq.s32.totalorder %v46, %v193
    %vm202 = vcmp.eq.s32.totalorder %v47, %v193
    %vm203 = vcmp.eq.s32.totalorder %v48, %v193
    %vm204 = vcmp.eq.s32.totalorder %v49, %v193
    %vm205 = vcmp.eq.s32.totalorder %v50, %v193
    %vm206 = vcmp.eq.s32.totalorder %v51, %v193
    %vm207 = vcmp.eq.s32.totalorder %v52, %v193
    %vm208 = vcmp.eq.s32.totalorder %v53, %v193
    %vm209 = vcmp.eq.s32.totalorder %v54, %v193
    %v210 = vsel %vm194, 1, 0
    %v211 = vsel %vm195, 1, 0
    %v212 = vsel %vm196, 1, 0
    %v213 = vsel %vm197, 1, 0
    %v214 = vsel %vm198, 1, 0
    %v215 = vsel %vm199, 1, 0
    %v216 = vsel %vm200, 1, 0
    %v217 = vsel %vm201, 1, 0
    %v218 = vsel %vm202, 1, 0
    %v219 = vsel %vm203, 1, 0
    %v220 = vsel %vm204, 1, 0
    %v221 = vsel %vm205, 1, 0
    %v222 = vsel %vm206, 1, 0
    %v223 = vsel %vm207, 1, 0
    %v224 = vsel %vm208, 1, 0
    %v225 = vsel %vm209, 1, 0
    %v226 = vcvt.s32.f32 %v210
    %v227 = vcvt.s32.f32 %v211
    %v228 = vcvt.s32.f32 %v212
    %v229 = vcvt.s32.f32 %v213
    %v230 = vcvt.s32.f32 %v214
    %v231 = vcvt.s32.f32 %v215
    %v232 = vcvt.s32.f32 %v216
    %v233 = vcvt.s32.f32 %v217
    %v234 = vcvt.s32.f32 %v218
    %v235 = vcvt.s32.f32 %v219
    %v236 = vcvt.s32.f32 %v220
    %v237 = vcvt.s32.f32 %v221
    %v238 = vcvt.s32.f32 %v222
    %v239 = vcvt.s32.f32 %v223
    %v240 = vcvt.s32.f32 %v224
    %v241 = vcvt.s32.f32 %v225
    %v242 = vadd.f32 %v176, %v226
    %v243 = vadd.f32 %v177, %v227
    %v244 = vadd.f32 %v178, %v228
    %v245 = vadd.f32 %v179, %v229
    %v246 = vadd.f32 %v180, %v230
    %v247 = vadd.f32 %v181, %v231
    %v248 = vadd.f32 %v182, %v232
    %v249 = vadd.f32 %v183, %v233
    %v250 = vadd.f32 %v184, %v234
    %v251 = vadd.f32 %v185, %v235
    %v252 = vadd.f32 %v186, %v236
    %v253 = vadd.f32 %v187, %v237
    %v254 = vadd.f32 %v188, %v238
    %v255 = vadd.f32 %v189, %v239
    %v256 = vadd.f32 %v190, %v240
    %v257 = vadd.f32 %v191, %v241
    %258 = vmatpush.msra.mxu0 %v257
    %259 = vmatpush.msra.mxu0 %v256
    %260 = vmatpush.msra.mxu0 %v255
    %261 = vmatpush.msra.mxu0 %v254
    %262 = vmatpush.msra.mxu0 %v253
    %263 = vmatpush.msra.mxu0 %v252
    %264 = vmatpush.msra.mxu0 %v251
    %265 = vmatpush.msra.mxu0 %v250
    %266 = vmatpush.msra.mxu0 %v249
    %267 = vmatpush.msra.mxu0 %v248
    %268 = vmatpush.msra.mxu0 %v247
    %269 = vmatpush.msra.mxu0 %v246
    %270 = vmatpush.msra.mxu0 %v245
    %271 = vmatpush.msra.mxu0 %v244
    %272 = vmatpush.msra.mxu0 %v243
    %273 = vmatpush.msra.mxu0 %v242
    %274 = vmatmul.f32.gmra.mxu0 %v55
    %v275 = vpop.f32.mrf.mxu0
    %v276 = vadd.f32 0.0, %v275
    %277 = vmatmul.f32.gmra.mxu0 %v56
    %v278 = vpop.f32.mrf.mxu0
    %v279 = vadd.f32 0.0, %v278
    %280 = vmatmul.f32.gmra.mxu0 %v57
    %v281 = vpop.f32.mrf.mxu0
    %v282 = vadd.f32 0.0, %v281
    %283 = vmatmul.f32.gmra.mxu0 %v58
    %v284 = vpop.f32.mrf.mxu0
    %v285 = vadd.f32 0.0, %v284
    %286 = vmatmul.f32.gmra.mxu0 %v59
    %v287 = vpop.f32.mrf.mxu0
    %v288 = vadd.f32 0.0, %v287
    %289 = vdwg.mxu0
    %v290 = vmul.f32 %v276, %v276
    %v291 = vmul.f32 %v279, %v279
    %v292 = vmul.f32 %v282, %v282
    %v293 = vmul.f32 %v285, %v285
    %v294 = vadd.f32 %v290, %v291
    %v295 = vadd.f32 %v294, %v292
    %v296 = vadd.f32 %v295, %v293
    %v297 = vrot.slane %v296, 4
    %v298 = vadd.f32 %v296, %v297
    %v299 = vrot.slane %v298, 2
    %v300 = vadd.f32 %v298, %v299
    %v301 = vrot.slane %v300, 1
    %v302 = vadd.f32 %v300, %v301
    %v303 = vsub.f32 %v302, %v288
    %v304 = vmul.f32 %v303, 0.5
    %v305 = vstv %s36
    %v306 = vmul.f32 %v288, %v305
    %v307 = vstv %s37
    %v308 = vadd.f32 %v306, %v307
    %v310 = vrot.slane %v304, 7
    %v312 = vadd.f32 %v308, %v310
    %v313 = vxor.u32 %v312, 2147483648
    %v314 = vmul.f32 %v313, 1.442695
    %v315 = vpow.pop %v314
    %v316 = vadd.f32 %v315, 1.0
    %v317 = vrcp.pop %v316
    %v318 = vmul.f32 %v316, %v317
    %v319 = vsub.f32 1.0, %v318
    %v320 = vmul.f32 %v317, %v319
    %v321 = vadd.f32 %v317, %v320
    %vm322 = vweird.f32 %v316
    %vm323 = vweird.f32 %v317
    %vm324 = vmor %vm322, %vm323
    %v325 = vsel %vm324, %v317, %v321
    %v326 = vand.u32 2147483647, %v316
    %vm327 = vcmp.eq.f32.partialorder %v326, 8.507059e+37
    %v328 = vand.u32 %v316, 2147483648
    %v329 = vor.u32 1.1754944e-38, %v328
    %v330 = vsel %vm327, %v329, %v325
    %v331 = vmul.f32 1.0, %v330
    %332 = vst [vmem:[#allocation7 - $0x1] sm:$0x2] %v331
    // Predicated region
    $region22: #{tpu_custom_call.1} parent=1 // pred_check
      _
    $region23: #{tpu_custom_call.1} parent=1 // pred_check_branch
      %334 = sbr.rel (0) target = $region25
    $region24: #{tpu_custom_call.1} parent=1 // pred_region
      %336 = vsyncadd [#allocation6], 0
      %s338 = sshll.u32 [#allocation7], 4
      %s339 = int_to_ptr.vmem [resolvable:$true] %s338
      %s340 = sshll.u32 %s4, 4
      %s341 = int_to_ptr.hbm [resolvable:$true] %s340
      %343 = dma.vmem_to_hbm [thread:$0]  %s339, 16, %s341, [#allocation6]
    $region25: #{tpu_custom_call.1} parent=1 // pred_fallthru
      _
    // Predicated region
    $region26: #{tpu_custom_call.1} parent=1 // pred_check
      _
    $region27: #{tpu_custom_call.1} parent=1 // pred_check_branch
      %345 = sbr.rel (0) target = $region29
    $region28: #{tpu_custom_call.1} parent=1 // pred_region
      %347 = dma.done [#allocation6], 16
    $region29: #{tpu_custom_call.1} parent=1 // pred_fallthru
      _
    %348 = vsyncpa [#allocation5], 1
    %349 = vsyncpa [#allocation6], 1

</llo_original>
